<compile_context>
chip_gen: v6e
topology: v6e:2x2x1
jax: 0.10.0
libtpu: 0.0.40
codegen_flags: <defaults>
</compile_context>

<pallas_src>
import jax
import jax.numpy as jnp
from jax.experimental import pallas as pl
from jax.experimental.pallas import tpu as pltpu

_OUT_COLS = 8           # narrow f32 output; columns 0/1 hold q1/q2
_MAX_BATCH_TILE = 1024  # rows per grid step for large batches
_ROW_ALIGN = 16         # bf16 sublane packing -> batch tiles multiple of 16


def _cdiv(a, b):
    return -(-a // b)


def _round_up(a, m):
    return _cdiv(a, m) * m


# ----------------------------------------------------------------------------
# Kernel: fused twin MLP; one batch tile fully resident in VMEM.
# ----------------------------------------------------------------------------
def _fused_twin_kernel(x_ref,
                       w1_ref, b1_ref,
                       w2_ref, b2_ref,
                       w3_ref, b3_ref,
                       out_ref):
    # Layer 1: (tile_b, in+act) bf16 @ (in+act, 2H) bf16 -> f32 accumulate.
    h = jnp.dot(x_ref[...], w1_ref[...], preferred_element_type=jnp.float32)
    h = jnp.maximum(h + b1_ref[...], 0.0)                       # ReLU (f32)

    # Layer 2: block-diagonal fused twin weights (2H, 2H).
    h = jnp.dot(h.astype(jnp.bfloat16), w2_ref[...],
                preferred_element_type=jnp.float32)
    h = jnp.maximum(h + b2_ref[...], 0.0)                       # ReLU (f32)

    # Layer 3: narrow head (2H, _OUT_COLS); cols 0/1 are q1/q2, rest zero.
    out = jnp.dot(h.astype(jnp.bfloat16), w3_ref[...],
                  preferred_element_type=jnp.float32)
    out_ref[...] = out + b3_ref[...]                             # f32 store


# ----------------------------------------------------------------------------
# Parameter prep: fuse the twin nets once (outside the hot path).
# ----------------------------------------------------------------------------
def fuse_twin_params(params):
    (w11, b11), (w12, b12), (w13, b13) = params["net1"]
    (w21, b21), (w22, b22), (w23, b23) = params["net2"]
    h1 = w11.shape[1]
    h2 = w12.shape[1]

    # Layer 1: widened [in+act, 2*h1].
    w1 = jnp.concatenate([w11, w21], axis=1)
    b1 = jnp.concatenate([b11, b21], axis=0)

    # Layer 2: block-diagonal [2*h1, 2*h2].
    z12 = jnp.zeros((h1, h2), dtype=w12.dtype)
    w2 = jnp.concatenate(
        [jnp.concatenate([w12, z12], axis=1),
         jnp.concatenate([z12, w22], axis=1)], axis=0)
    b2 = jnp.concatenate([b12, b22], axis=0)

    # Layer 3: block-structured [2*h2, _OUT_COLS]:
    #   rows :h2  feed column 0 (q1), rows h2: feed column 1 (q2), rest zero.
    w3 = jnp.zeros((2 * h2, _OUT_COLS), dtype=w13.dtype)
    w3 = w3.at[:h2, 0:1].set(w13)
    w3 = w3.at[h2:, 1:2].set(w23)
    b3 = jnp.zeros((_OUT_COLS,), dtype=b13.dtype)
    b3 = b3.at[0].set(b13[0]).at[1].set(b23[0])

    bf16, f32 = jnp.bfloat16, jnp.float32
    return {
        "w1": w1.astype(bf16),
        "b1": b1.reshape(1, -1).astype(f32),
        "w2": w2.astype(bf16),
        "b2": b2.reshape(1, -1).astype(f32),
        "w3": w3.astype(bf16),
        "b3": b3.reshape(1, -1).astype(f32),
    }


# ----------------------------------------------------------------------------
# Forward wrapper (matches TwinnedStateActionFunction.forward semantics).
# ----------------------------------------------------------------------------
def twinned_q_forward(states, actions, fused):
    B = states.shape[0]

    # Concat once (like the PyTorch module) and cast to bf16 once: a single
    # input DMA stream and no in-kernel input casts.
    x = jnp.concatenate([states, actions], axis=-1).astype(jnp.bfloat16)
    in_dim = x.shape[1]
    hidden = fused["w2"].shape[0]

    # Balanced batch tiles: n_tiles = cdiv(B, MAX); >=2 when B >= 1024 so both
    # v7x TensorCores get work; rows rounded to 16 for bf16 sublane packing.
    n_tiles = max(1, _cdiv(B, _MAX_BATCH_TILE))
    if B >= 1024 and n_tiles < 2:
        n_tiles = 2
    tile_b = max(_ROW_ALIGN, _round_up(_cdiv(B, n_tiles), _ROW_ALIGN))
    bp = n_tiles * tile_b
    if bp != B:
        x = jnp.pad(x, ((0, bp - B), (0, 0)))

    def pinned(arr):
        return pl.BlockSpec(arr.shape, lambda i: (0, 0))

    flops = 2 * bp * (in_dim * hidden + hidden * hidden + hidden * _OUT_COLS)
    weight_bytes = (2 * (fused["w1"].size + fused["w2"].size + fused["w3"].size)
                    + 4 * (fused["b1"].size + fused["b2"].size + fused["b3"].size))
    bytes_accessed = x.size * 2 + weight_bytes + bp * _OUT_COLS * 4
    cost = pl.CostEstimate(flops=flops, transcendentals=0,
                           bytes_accessed=bytes_accessed)

    out = pl.pallas_call(
        _fused_twin_kernel,
        out_shape=jax.ShapeDtypeStruct((bp, _OUT_COLS), jnp.float32),
        grid=(n_tiles,),
        in_specs=[
            pl.BlockSpec((tile_b, in_dim), lambda i: (i, 0)),   # fused input
            pinned(fused["w1"]), pinned(fused["b1"]),
            pinned(fused["w2"]), pinned(fused["b2"]),
            pinned(fused["w3"]), pinned(fused["b3"]),
        ],
        out_specs=pl.BlockSpec((tile_b, _OUT_COLS), lambda i: (i, 0)),
        compiler_params=pltpu.CompilerParams(
            dimension_semantics=("parallel",)),
        cost_estimate=cost,
    )(x, fused["w1"], fused["b1"], fused["w2"], fused["b2"],
      fused["w3"], fused["b3"])

    q1 = out[:B, 0:1]
    q2 = out[:B, 1:2]
    return q1, q2


# ----------------------------------------------------------------------------
# Init + references.
# ----------------------------------------------------------------------------
def he_init_mlp(key, dims):
    layers = []
    for i in range(len(dims) - 1):
        key, wk = jax.random.split(key)
        std = jnp.sqrt(2.0 / dims[i])
        w = jax.random.normal(wk, (dims[i], dims[i + 1]), dtype=jnp.float32) * std
        b = jnp.zeros((dims[i + 1],), dtype=jnp.float32)
        layers.append((w, b))
    return layers, key


def make_params(key, input_dim, action_dim, hidden_units=(64, 64)):
    dims = (input_dim + action_dim,) + tuple(hidden_units) + (1,)
    net1, key = he_init_mlp(key, dims)
    net2, key = he_init_mlp(key, dims)
    return {"net1": net1, "net2": net2}


def reference_forward_f32(states, actions, params):
    """Pure-JAX f32 reference matching the PyTorch module."""
    xs = jnp.concatenate([states, actions], axis=-1)

    def mlp(x, layers):
        for i, (w, b) in enumerate(layers):
            x = x @ w + b
            if i < len(layers) - 1:
                x = jnp.maximum(x, 0.0)
        return x

    return mlp(xs, params["net1"]), mlp(xs, params["net2"])


def reference_forward_bf16(states, actions, params):
    """Reference with the same bf16-matmul / f32-accumulate numerics as the kernel."""
    xs = jnp.concatenate([states, actions], axis=-1)

    def mlp(x, layers):
        for i, (w, b) in enumerate(layers):
            x = jnp.dot(x.astype(jnp.bfloat16), w.astype(jnp.bfloat16),
                        preferred_element_type=jnp.float32) + b
            if i < len(layers) - 1:
                x = jnp.maximum(x, 0.0)
        return x

    return mlp(xs, params["net1"]), mlp(xs, params["net2"])


if __name__ == "__main__":
    key = jax.random.PRNGKey(0)
    B, input_dim, action_dim = 8, 12, 4

    key, ks, ka, kp = jax.random.split(key, 4)
    states = jax.random.normal(ks, (B, input_dim), dtype=jnp.float32)
    actions = jax.random.normal(ka, (B, action_dim), dtype=jnp.float32)
    params = make_params(kp, input_dim, action_dim, hidden_units=(64, 64))
    fused = fuse_twin_params(params)

    fwd = jax.jit(twinned_q_forward)
    q1, q2 = fwd(states, actions, fused)
    jax.block_until_ready((q1, q2))

    assert q1.shape == (B, 1) and q2.shape == (B, 1)

    # Tight check vs. a bf16-matmul reference (same numerics as the kernel).
    b1_ref, b2_ref = reference_forward_bf16(states, actions, params)
    assert jnp.allclose(q1, b1_ref, atol=5e-3, rtol=5e-3), (
        float(jnp.max(jnp.abs(q1 - b1_ref))))
    assert jnp.allclose(q2, b2_ref, atol=5e-3, rtol=5e-3), (
        float(jnp.max(jnp.abs(q2 - b2_ref))))

    # Loose check vs. the full-f32 module semantics (bf16 weight rounding only).
    r1, r2 = reference_forward_f32(states, actions, params)
    assert jnp.allclose(q1, r1, atol=1e-1, rtol=1e-1)
    assert jnp.allclose(q2, r2, atol=1e-1, rtol=1e-1)

    print("KERNEL_OK")
</pallas_src>

<mosaic_0001>
module attributes {stable_mosaic.version = 11 : i64} {
  func.func @_fused_twin_kernel(%arg0: i32, %arg1: memref<16x16xbf16, #tpu.memory_space<vmem>>, %arg2: memref<16x128xbf16, #tpu.memory_space<vmem>>, %arg3: memref<1x128xf32, #tpu.memory_space<vmem>>, %arg4: memref<128x128xbf16, #tpu.memory_space<vmem>>, %arg5: memref<1x128xf32, #tpu.memory_space<vmem>>, %arg6: memref<128x8xbf16, #tpu.memory_space<vmem>>, %arg7: memref<1x8xf32, #tpu.memory_space<vmem>>, %arg8: memref<16x8xf32, #tpu.memory_space<vmem>>) attributes {dimension_semantics = [#tpu.dimension_semantics<parallel>], iteration_bounds = array<i64: 1>, scalar_prefetch = 0 : i64, scratch_operands = 0 : i64, tpu.core_type = #tpu.core_type<tc>, window_params = [{transform_indices = @transform_0, window_bounds = array<i64: 16, 16>}, {pipeline_mode = #tpu.pipeline_mode<synchronous>, transform_indices = @transform_1, window_bounds = array<i64: 16, 128>}, {pipeline_mode = #tpu.pipeline_mode<synchronous>, transform_indices = @transform_2, window_bounds = array<i64: 1, 128>}, {pipeline_mode = #tpu.pipeline_mode<synchronous>, transform_indices = @transform_3, window_bounds = array<i64: 128, 128>}, {pipeline_mode = #tpu.pipeline_mode<synchronous>, transform_indices = @transform_4, window_bounds = array<i64: 1, 128>}, {pipeline_mode = #tpu.pipeline_mode<synchronous>, transform_indices = @transform_5, window_bounds = array<i64: 128, 8>}, {pipeline_mode = #tpu.pipeline_mode<synchronous>, transform_indices = @transform_6, window_bounds = array<i64: 1, 8>}, {transform_indices = @transform_7, window_bounds = array<i64: 16, 8>}]} {
    %c0 = arith.constant 0 : index
    %c0_0 = arith.constant 0 : index
    %0 = vector.load %arg1[%c0, %c0_0] : memref<16x16xbf16, #tpu.memory_space<vmem>>, vector<16x16xbf16>
    %c0_1 = arith.constant 0 : index
    %c0_2 = arith.constant 0 : index
    %1 = vector.load %arg2[%c0_1, %c0_2] : memref<16x128xbf16, #tpu.memory_space<vmem>>, vector<16x128xbf16>
    %cst = arith.constant dense<0.000000e+00> : vector<16x128xf32>
    %2 = tpu.matmul %0, %1, %cst {dimension_numbers = #tpu.dot_dimension_numbers<[1], [0], [0], [1], [0, 0, 1, 1], [], []>} : vector<16x16xbf16>, vector<16x128xbf16>, vector<16x128xf32> -> vector<16x128xf32>
    %c0_3 = arith.constant 0 : index
    %c0_4 = arith.constant 0 : index
    %3 = vector.load %arg3[%c0_3, %c0_4] : memref<1x128xf32, #tpu.memory_space<vmem>>, vector<1x128xf32>
    %4 = vector.broadcast %3 : vector<1x128xf32> to vector<16x128xf32>
    %5 = arith.addf %2, %4 : vector<16x128xf32>
    %cst_5 = arith.constant 0.000000e+00 : f32
    %6 = vector.broadcast %cst_5 : f32 to vector<16x128xf32>
    %7 = arith.maximumf %5, %6 : vector<16x128xf32>
    %8 = arith.truncf %7 : vector<16x128xf32> to vector<16x128xbf16>
    %c0_6 = arith.constant 0 : index
    %c0_7 = arith.constant 0 : index
    %9 = vector.load %arg4[%c0_6, %c0_7] : memref<128x128xbf16, #tpu.memory_space<vmem>>, vector<128x128xbf16>
    %cst_8 = arith.constant dense<0.000000e+00> : vector<16x128xf32>
    %10 = tpu.matmul %8, %9, %cst_8 {dimension_numbers = #tpu.dot_dimension_numbers<[1], [0], [0], [1], [0, 0, 1, 1], [], []>} : vector<16x128xbf16>, vector<128x128xbf16>, vector<16x128xf32> -> vector<16x128xf32>
    %c0_9 = arith.constant 0 : index
    %c0_10 = arith.constant 0 : index
    %11 = vector.load %arg5[%c0_9, %c0_10] : memref<1x128xf32, #tpu.memory_space<vmem>>, vector<1x128xf32>
    %12 = vector.broadcast %11 : vector<1x128xf32> to vector<16x128xf32>
    %13 = arith.addf %10, %12 : vector<16x128xf32>
    %cst_11 = arith.constant 0.000000e+00 : f32
    %14 = vector.broadcast %cst_11 : f32 to vector<16x128xf32>
    %15 = arith.maximumf %13, %14 : vector<16x128xf32>
    %16 = arith.truncf %15 : vector<16x128xf32> to vector<16x128xbf16>
    %c0_12 = arith.constant 0 : index
    %c0_13 = arith.constant 0 : index
    %17 = vector.load %arg6[%c0_12, %c0_13] : memref<128x8xbf16, #tpu.memory_space<vmem>>, vector<128x8xbf16>
    %cst_14 = arith.constant dense<0.000000e+00> : vector<16x8xf32>
    %18 = tpu.matmul %16, %17, %cst_14 {dimension_numbers = #tpu.dot_dimension_numbers<[1], [0], [0], [1], [0, 0, 1, 1], [], []>} : vector<16x128xbf16>, vector<128x8xbf16>, vector<16x8xf32> -> vector<16x8xf32>
    %c0_15 = arith.constant 0 : index
    %c0_16 = arith.constant 0 : index
    %19 = vector.load %arg7[%c0_15, %c0_16] : memref<1x8xf32, #tpu.memory_space<vmem>>, vector<1x8xf32>
    %20 = vector.broadcast %19 : vector<1x8xf32> to vector<16x8xf32>
    %21 = arith.addf %18, %20 : vector<16x8xf32>
    %c0_17 = arith.constant 0 : index
    %c0_18 = arith.constant 0 : index
    %22 = vector.load %arg8[%c0_17, %c0_18] : memref<16x8xf32, #tpu.memory_space<vmem>>, vector<16x8xf32>
    tpu.vector_store %arg8[%c0_17, %c0_18], %21 {strides = array<i32>} : memref<16x8xf32, #tpu.memory_space<vmem>>, vector<16x8xf32>,
    return
  }
  func.func @transform_0(%arg0: i32) -> (i32, i32) {
    %c0_i32 = arith.constant 0 : i32
    %c0_i32_0 = arith.constant 0 : i32
    return %arg0, %c0_i32 : i32, i32
  }
  func.func @transform_1(%arg0: i32) -> (i32, i32) {
    %c0_i32 = arith.constant 0 : i32
    %c0_i32_0 = arith.constant 0 : i32
    %c0_i32_1 = arith.constant 0 : i32
    return %c0_i32, %c0_i32_0 : i32, i32
  }
  func.func @transform_2(%arg0: i32) -> (i32, i32) {
    %c0_i32 = arith.constant 0 : i32
    %c0_i32_0 = arith.constant 0 : i32
    %c0_i32_1 = arith.constant 0 : i32
    return %c0_i32, %c0_i32_0 : i32, i32
  }
  func.func @transform_3(%arg0: i32) -> (i32, i32) {
    %c0_i32 = arith.constant 0 : i32
    %c0_i32_0 = arith.constant 0 : i32
    %c0_i32_1 = arith.constant 0 : i32
    return %c0_i32, %c0_i32_0 : i32, i32
  }
  func.func @transform_4(%arg0: i32) -> (i32, i32) {
    %c0_i32 = arith.constant 0 : i32
    %c0_i32_0 = arith.constant 0 : i32
    %c0_i32_1 = arith.constant 0 : i32
    return %c0_i32, %c0_i32_0 : i32, i32
  }
  func.func @transform_5(%arg0: i32) -> (i32, i32) {
    %c0_i32 = arith.constant 0 : i32
    %c0_i32_0 = arith.constant 0 : i32
    %c0_i32_1 = arith.constant 0 : i32
    return %c0_i32, %c0_i32_0 : i32, i32
  }
  func.func @transform_6(%arg0: i32) -> (i32, i32) {
    %c0_i32 = arith.constant 0 : i32
    %c0_i32_0 = arith.constant 0 : i32
    %c0_i32_1 = arith.constant 0 : i32
    return %c0_i32, %c0_i32_0 : i32, i32
  }
  func.func @transform_7(%arg0: i32) -> (i32, i32) {
    %c0_i32 = arith.constant 0 : i32
    %c0_i32_0 = arith.constant 0 : i32
    return %arg0, %c0_i32 : i32, i32
  }
}

</mosaic_0001>

<llo_original>
// kernel: twinned_q_forward.1
$region0: #{twinned_q_forward.1}
  #allocation0 [shape = 'u32[]', space=smem, size = 0x4, offset = 0x4, fixed_abs, tag = 'smem constant byte address 0x4 - core index']
  #allocation1 [shape = 'u32[144,128]{1,0:T(1,128)}', space=vmem, size = 0x12000, scoped, tag = 'internal scratch']
  %s0 = inlined_call_operand.vmem [shape: bf16[16,16], index: 0, kind: input, shape index: {}]
  %s1 = inlined_call_operand.vmem [shape: bf16[16,128], index: 1, kind: input, shape index: {}]
  %s2 = inlined_call_operand.vmem [shape: f32[1,128], index: 2, kind: input, shape index: {}]
  %s3 = inlined_call_operand.vmem [shape: bf16[128,128], index: 3, kind: input, shape index: {}]
  %s4 = inlined_call_operand.vmem [shape: f32[1,128], index: 4, kind: input, shape index: {}]
  %s5 = inlined_call_operand.vmem [shape: bf16[128,8], index: 5, kind: input, shape index: {}]
  %s6 = inlined_call_operand.vmem [shape: f32[1,8], index: 6, kind: input, shape index: {}]
  %s7 = inlined_call_operand.vmem [shape: f32[16,8], index: 7, kind: output, shape index: {}]
  %s8 = sld [smem:[#allocation0]]
  $region38: #{twinned_q_forward.1} parent=0
    _
  %s10 = ssub.s32 1, %s8
  %s11 = scalar_select 0, %s10, %s8
  // Predicated region
  $region2: #{twinned_q_forward.1} parent=0 // pred_check
    _
  $region3: #{twinned_q_forward.1} parent=0 // pred_check_branch
    %13 = sbr.rel (0) target = $region5
  $region4: #{twinned_q_forward.1} parent=0 // pred_region
    _
  $region5: #{twinned_q_forward.1} parent=0 // pred_fallthru
    _
  // Predicated region
  $region6: #{twinned_q_forward.1} parent=0 // pred_check
    _
  $region7: #{twinned_q_forward.1} parent=0 // pred_check_branch
    %15 = sbr.rel (0) target = $region9
  $region8: #{twinned_q_forward.1} parent=0 // pred_region
    _
  $region9: #{twinned_q_forward.1} parent=0 // pred_fallthru
    _
  // Predicated region
  $region10: #{twinned_q_forward.1} parent=0 // pred_check
    _
  $region11: #{twinned_q_forward.1} parent=0 // pred_check_branch
    %17 = sbr.rel (0) target = $region13
  $region12: #{twinned_q_forward.1} parent=0 // pred_region
    _
  $region13: #{twinned_q_forward.1} parent=0 // pred_fallthru
    _
  // Predicated region
  $region14: #{twinned_q_forward.1} parent=0 // pred_check
    _
  $region15: #{twinned_q_forward.1} parent=0 // pred_check_branch
    %19 = sbr.rel (0) target = $region17
  $region16: #{twinned_q_forward.1} parent=0 // pred_region
    _
  $region17: #{twinned_q_forward.1} parent=0 // pred_fallthru
    _
  // Predicated region
  $region18: #{twinned_q_forward.1} parent=0 // pred_check
    _
  $region19: #{twinned_q_forward.1} parent=0 // pred_check_branch
    %21 = sbr.rel (0) target = $region21
  $region20: #{twinned_q_forward.1} parent=0 // pred_region
    _
  $region21: #{twinned_q_forward.1} parent=0 // pred_fallthru
    _
  // Predicated region
  $region22: #{twinned_q_forward.1} parent=0 // pred_check
    _
  $region23: #{twinned_q_forward.1} parent=0 // pred_check_branch
    %23 = sbr.rel (0) target = $region25
  $region24: #{twinned_q_forward.1} parent=0 // pred_region
    _
  $region25: #{twinned_q_forward.1} parent=0 // pred_fallthru
    _
  // Predicated region
  $region26: #{twinned_q_forward.1} parent=0 // pred_check
    _
  $region27: #{twinned_q_forward.1} parent=0 // pred_check_branch
    %25 = sbr.rel (0) target = $region29
  $region28: #{twinned_q_forward.1} parent=0 // pred_region
    _
  $region29: #{twinned_q_forward.1} parent=0 // pred_fallthru
    _
  %v27 = vld [vmem:[%s0] sm:$0xf]
  %v28 = vld [vmem:[%s0 + $0x4] sm:$0xf]
  %v29 = vld [vmem:[%s1] sm:$0xf]
  %v30 = vld [vmem:[%s1 + $0x4] sm:$0xf]
  %v31 = vld [vmem:[%s2] sm:$0x1]
  %v33 = vlaneseq
  %v34 = vshrl.u32 %v33, 7
  %v35 = vsub.s32 0, %v34
  %v36 = vrot.slane %v31, %v35
  %v40 = vunpack.c.l.b16 %v27
  %v41 = vunpack.c.l.b16 %v28
  %v42 = vpack.c.b16 %v41, %v40
  %v45 = vunpack.c.l.b16 %v29
  %v46 = vunpack.c.l.b16 %v30
  %v47 = vpack.c.b16 %v46, %v45
  %vm49 = vcmask 130048
  %v51 = vsel %vm49, %v42, 0
  %53 = vmatprep.subr.bf16.mxu0 0
  %54 = vmatpush1.bf16.msra.mxu0 0
  %55 = vmatprep.subr.bf16.mxu0 0
  %56 = vmatpush1.bf16.msra.mxu0 0
  %57 = vmatprep.subr.bf16.mxu0 0
  %58 = vmatpush1.bf16.msra.mxu0 0
  %59 = vmatprep.subr.bf16.mxu0 0
  %60 = vmatpush1.bf16.msra.mxu0 0
  %61 = vmatprep.subr.bf16.mxu0 0
  %62 = vmatpush1.bf16.msra.mxu0 0
  %63 = vmatprep.subr.bf16.mxu0 0
  %64 = vmatpush1.bf16.msra.mxu0 0
  %65 = vmatprep.subr.bf16.mxu0 0
  %66 = vmatpush1.bf16.msra.mxu0 0
  %67 = vmatprep.subr.bf16.mxu0 0
  %68 = vmatpush1.bf16.msra.mxu0 %v47
  %69 = vmatprep.subr.bf16.mxu0 0
  %70 = vmatpush2.bf16.msra.mxu0 0
  %71 = vmatprep.subr.bf16.mxu0 0
  %72 = vmatpush2.bf16.msra.mxu0 0
  %73 = vmatprep.subr.bf16.mxu0 0
  %74 = vmatpush2.bf16.msra.mxu0 0
  %75 = vmatprep.subr.bf16.mxu0 0
  %76 = vmatpush2.bf16.msra.mxu0 0
  %77 = vmatprep.subr.bf16.mxu0 0
  %78 = vmatpush2.bf16.msra.mxu0 0
  %79 = vmatprep.subr.bf16.mxu0 0
  %80 = vmatpush2.bf16.msra.mxu0 0
  %81 = vmatprep.subr.bf16.mxu0 0
  %82 = vmatpush2.bf16.msra.mxu0 0
  %83 = vmatprep.subr.bf16.mxu0 0
  %84 = vmatpush2.bf16.msra.mxu0 0
  %85 = vmatprep.mubr.bf16.mxu0 0
  %86 = vmatmul.mubr.bf16.gmra.mxu0 %v51
  %v87 = vpop.f32.mrf.mxu0
  %v88 = vadd.f32 %v36, %v87
  %v89 = vpop.f32.mrf.mxu0
  %v90 = vpop.f32.mrf.mxu0
  %v91 = vadd.f32 %v36, %v90
  %v92 = vpop.f32.mrf.mxu0
  %93 = vdwg.mxu0
  %v94 = vmax.f32 %v88, 0.0
  %v95 = vmax.f32 %v91, 0.0
  %v96 = vpack.c.bf16 %v95, %v94
  %v97 = vld [vmem:[%s3] sm:$0xf]
  %v98 = vld [vmem:[%s3 + $0x4] sm:$0xf]
  %v99 = vld [vmem:[%s3 + $0x8] sm:$0xf]
  %v100 = vld [vmem:[%s3 + $0xc] sm:$0xf]
  %v101 = vld [vmem:[%s3 + $0x10] sm:$0xf]
  %v102 = vld [vmem:[%s3 + $0x14] sm:$0xf]
  %v103 = vld [vmem:[%s3 + $0x18] sm:$0xf]
  %v104 = vld [vmem:[%s3 + $0x1c] sm:$0xf]
  %v105 = vld [vmem:[%s3 + $0x20] sm:$0xf]
  %v106 = vld [vmem:[%s3 + $0x24] sm:$0xf]
  %v107 = vld [vmem:[%s3 + $0x28] sm:$0xf]
  %v108 = vld [vmem:[%s3 + $0x2c] sm:$0xf]
  %v109 = vld [vmem:[%s3 + $0x30] sm:$0xf]
  %v110 = vld [vmem:[%s3 + $0x34] sm:$0xf]
  %v111 = vld [vmem:[%s3 + $0x38] sm:$0xf]
  %v112 = vld [vmem:[%s3 + $0x3c] sm:$0xf]
  %v113 = vld [vmem:[%s4] sm:$0x1]
  %v115 = vlaneseq
  %v116 = vshrl.u32 %v115, 7
  %v117 = vsub.s32 0, %v116
  %v118 = vrot.slane %v113, %v117
  %v136 = vunpack.c.l.b16 %v97
  %v137 = vunpack.c.l.b16 %v98
  %v138 = vunpack.c.l.b16 %v99
  %v139 = vunpack.c.l.b16 %v100
  %v140 = vunpack.c.l.b16 %v101
  %v141 = vunpack.c.l.b16 %v102
  %v142 = vunpack.c.l.b16 %v103
  %v143 = vunpack.c.l.b16 %v104
  %v144 = vunpack.c.l.b16 %v105
  %v145 = vunpack.c.l.b16 %v106
  %v146 = vunpack.c.l.b16 %v107
  %v147 = vunpack.c.l.b16 %v108
  %v148 = vunpack.c.l.b16 %v109
  %v149 = vunpack.c.l.b16 %v110
  %v150 = vunpack.c.l.b16 %v111
  %v151 = vunpack.c.l.b16 %v112
  %v152 = vpack.c.b16 %v137, %v136
  %v153 = vpack.c.b16 %v139, %v138
  %v154 = vpack.c.b16 %v141, %v140
  %v155 = vpack.c.b16 %v143, %v142
  %v156 = vpack.c.b16 %v145, %v144
  %v157 = vpack.c.b16 %v147, %v146
  %v158 = vpack.c.b16 %v149, %v148
  %v159 = vpack.c.b16 %v151, %v150
  %168 = vmatprep.subr.bf16.mxu0 0
  %169 = vmatpush1.bf16.msra.mxu0 %v159
  %170 = vmatprep.subr.bf16.mxu0 0
  %171 = vmatpush1.bf16.msra.mxu0 %v158
  %172 = vmatprep.subr.bf16.mxu0 0
  %173 = vmatpush1.bf16.msra.mxu0 %v157
  %174 = vmatprep.subr.bf16.mxu0 0
  %175 = vmatpush1.bf16.msra.mxu0 %v156
  %176 = vmatprep.subr.bf16.mxu0 0
  %177 = vmatpush1.bf16.msra.mxu0 %v155
  %178 = vmatprep.subr.bf16.mxu0 0
  %179 = vmatpush1.bf16.msra.mxu0 %v154
  %180 = vmatprep.subr.bf16.mxu0 0
  %181 = vmatpush1.bf16.msra.mxu0 %v153
  %182 = vmatprep.subr.bf16.mxu0 0
  %183 = vmatpush1.bf16.msra.mxu0 %v152
  %184 = vmatprep.subr.bf16.mxu0 0
  %185 = vmatpush2.bf16.msra.mxu0 0
  %186 = vmatprep.subr.bf16.mxu0 0
  %187 = vmatpush2.bf16.msra.mxu0 0
  %188 = vmatprep.subr.bf16.mxu0 0
  %189 = vmatpush2.bf16.msra.mxu0 0
  %190 = vmatprep.subr.bf16.mxu0 0
  %191 = vmatpush2.bf16.msra.mxu0 0
  %192 = vmatprep.subr.bf16.mxu0 0
  %193 = vmatpush2.bf16.msra.mxu0 0
  %194 = vmatprep.subr.bf16.mxu0 0
  %195 = vmatpush2.bf16.msra.mxu0 0
  %196 = vmatprep.subr.bf16.mxu0 0
  %197 = vmatpush2.bf16.msra.mxu0 0
  %198 = vmatprep.subr.bf16.mxu0 0
  %199 = vmatpush2.bf16.msra.mxu0 0
  %200 = vmatprep.mubr.bf16.mxu0 0
  %201 = vmatmul.mubr.bf16.gmra.mxu0 %v96
  %v202 = vpop.f32.mrf.mxu0
  %v203 = vadd.f32 %v118, %v202
  %v204 = vpop.f32.mrf.mxu0
  %v205 = vpop.f32.mrf.mxu0
  %v206 = vadd.f32 %v118, %v205
  %v207 = vpop.f32.mrf.mxu0
  %208 = vdwg.mxu0
  %v209 = vmax.f32 %v203, 0.0
  %v210 = vmax.f32 %v206, 0.0
  %v211 = vpack.c.bf16 %v210, %v209
  %v212 = vld [vmem:[%s5] sm:$0xf]
  %v213 = vld [vmem:[%s5 + $0x4] sm:$0xf]
  %v214 = vld [vmem:[%s5 + $0x8] sm:$0xf]
  %v215 = vld [vmem:[%s5 + $0xc] sm:$0xf]
  %v216 = vld [vmem:[%s5 + $0x10] sm:$0xf]
  %v217 = vld [vmem:[%s5 + $0x14] sm:$0xf]
  %v218 = vld [vmem:[%s5 + $0x18] sm:$0xf]
  %v219 = vld [vmem:[%s5 + $0x1c] sm:$0xf]
  %v220 = vld [vmem:[%s5 + $0x20] sm:$0xf]
  %v221 = vld [vmem:[%s5 + $0x24] sm:$0xf]
  %v222 = vld [vmem:[%s5 + $0x28] sm:$0xf]
  %v223 = vld [vmem:[%s5 + $0x2c] sm:$0xf]
  %v224 = vld [vmem:[%s5 + $0x30] sm:$0xf]
  %v225 = vld [vmem:[%s5 + $0x34] sm:$0xf]
  %v226 = vld [vmem:[%s5 + $0x38] sm:$0xf]
  %v227 = vld [vmem:[%s5 + $0x3c] sm:$0xf]
  %v228 = vld [vmem:[%s6] sm:$0x1]
  %v230 = vlaneseq
  %v231 = vshrl.u32 %v230, 7
  %v232 = vsub.s32 0, %v231
  %v233 = vrot.slane %v228, %v232
  %v251 = vunpack.c.l.b16 %v212
  %v252 = vunpack.c.l.b16 %v213
  %v253 = vunpack.c.l.b16 %v214
  %v254 = vunpack.c.l.b16 %v215
  %v255 = vunpack.c.l.b16 %v216
  %v256 = vunpack.c.l.b16 %v217
  %v257 = vunpack.c.l.b16 %v218
  %v258 = vunpack.c.l.b16 %v219
  %v259 = vunpack.c.l.b16 %v220
  %v260 = vunpack.c.l.b16 %v221
  %v261 = vunpack.c.l.b16 %v222
  %v262 = vunpack.c.l.b16 %v223
  %v263 = vunpack.c.l.b16 %v224
  %v264 = vunpack.c.l.b16 %v225
  %v265 = vunpack.c.l.b16 %v226
  %v266 = vunpack.c.l.b16 %v227
  %v267 = vpack.c.b16 %v252, %v251
  %v268 = vpack.c.b16 %v254, %v253
  %v269 = vpack.c.b16 %v256, %v255
  %v270 = vpack.c.b16 %v258, %v257
  %v271 = vpack.c.b16 %v260, %v259
  %v272 = vpack.c.b16 %v262, %v261
  %v273 = vpack.c.b16 %v264, %v263
  %v274 = vpack.c.b16 %v266, %v265
  %283 = vmatprep.subr.bf16.mxu0 0
  %284 = vmatpush1.bf16.msra.mxu0 %v274
  %285 = vmatprep.subr.bf16.mxu0 0
  %286 = vmatpush1.bf16.msra.mxu0 %v273
  %287 = vmatprep.subr.bf16.mxu0 0
  %288 = vmatpush1.bf16.msra.mxu0 %v272
  %289 = vmatprep.subr.bf16.mxu0 0
  %290 = vmatpush1.bf16.msra.mxu0 %v271
  %291 = vmatprep.subr.bf16.mxu0 0
  %292 = vmatpush1.bf16.msra.mxu0 %v270
  %293 = vmatprep.subr.bf16.mxu0 0
  %294 = vmatpush1.bf16.msra.mxu0 %v269
  %295 = vmatprep.subr.bf16.mxu0 0
  %296 = vmatpush1.bf16.msra.mxu0 %v268
  %297 = vmatprep.subr.bf16.mxu0 0
  %298 = vmatpush1.bf16.msra.mxu0 %v267
  %299 = vmatprep.subr.bf16.mxu0 0
  %300 = vmatpush2.bf16.msra.mxu0 0
  %301 = vmatprep.subr.bf16.mxu0 0
  %302 = vmatpush2.bf16.msra.mxu0 0
  %303 = vmatprep.subr.bf16.mxu0 0
  %304 = vmatpush2.bf16.msra.mxu0 0
  %305 = vmatprep.subr.bf16.mxu0 0
  %306 = vmatpush2.bf16.msra.mxu0 0
  %307 = vmatprep.subr.bf16.mxu0 0
  %308 = vmatpush2.bf16.msra.mxu0 0
  %309 = vmatprep.subr.bf16.mxu0 0
  %310 = vmatpush2.bf16.msra.mxu0 0
  %311 = vmatprep.subr.bf16.mxu0 0
  %312 = vmatpush2.bf16.msra.mxu0 0
  %313 = vmatprep.subr.bf16.mxu0 0
  %314 = vmatpush2.bf16.msra.mxu0 0
  %315 = vmatprep.mubr.bf16.mxu0 0
  %316 = vmatmul.mubr.bf16.gmra.mxu0 %v211
  %v317 = vpop.f32.mrf.mxu0
  %v318 = vadd.f32 %v233, %v317
  %v319 = vpop.f32.mrf.mxu0
  %v320 = vpop.f32.mrf.mxu0
  %v321 = vadd.f32 %v233, %v320
  %v322 = vpop.f32.mrf.mxu0
  %323 = vdwg.mxu0
  %vm324 = vcmask 64512
  %325 = vst.msk [vmem:[%s7] sm:$0xff] %vm324, %v318
  %326 = vst.msk [vmem:[%s7 + $0x8] sm:$0xff] %vm324, %v321
  // Predicated region
  $region30: #{twinned_q_forward.1} parent=0 // pred_check
    _
  $region31: #{twinned_q_forward.1} parent=0 // pred_check_branch
    %328 = sbr.rel (0) target = $region33
  $region32: #{twinned_q_forward.1} parent=0 // pred_region
    _
  $region33: #{twinned_q_forward.1} parent=0 // pred_fallthru
    _
  // Predicated region
  $region34: #{twinned_q_forward.1} parent=0 // pred_check
    _
  $region35: #{twinned_q_forward.1} parent=0 // pred_check_branch
    %330 = sbr.rel (0) target = $region37
  $region36: #{twinned_q_forward.1} parent=0 // pred_region
    _
  $region37: #{twinned_q_forward.1} parent=0 // pred_fallthru
    _

</llo_original>
